<compile_context>
chip_gen: v7x
topology: tpu7x:2x2x1
jax: 0.10.0
libtpu: 0.0.40
codegen_flags: <defaults>
</compile_context>

<pallas_src>
import functools

import jax
import jax.numpy as jnp
from jax import lax
from jax.experimental import pallas as pl
from jax.experimental.pallas import tpu as pltpu


def _pick_tile(n, candidates=(512, 256, 128)):
    for c in candidates:
        if n % c == 0:
            return c
    return n


def _compiler_params():
    # 48 MiB scoped VMEM: safe on v7x (64 MiB physical), generous on v5e/v6e.
    # TODO(synk): on v7x, mark the grid-invariant dictionary operands with
    # pipeline_mode=pl.Buffered(1) to halve their VMEM footprint at b_tile=512.
    return pltpu.CompilerParams(dimension_semantics=("parallel",),
                                vmem_limit_bytes=48 * 1024 * 1024)


# -------- kernel A: normalize + similarity + EC bias + ssq + top-k ----------
def _encode_kernel(x_ref, dnt_ref, bias_ref, xn_ref, topv_ref, topi_ref,
                   ssq_ref, *, matmul_dtype):
    k = topv_ref.shape[1]
    x = x_ref[...].astype(jnp.float32)                            # (BT, D)
    nrm = jnp.sqrt(jnp.sum(x * x, axis=1, keepdims=True))
    xn = x / jnp.maximum(nrm, 1e-12)                              # F.normalize(dim=1)
    xn_ref[...] = xn
    ssq_ref[...] = jnp.sum(xn * xn, axis=1, keepdims=True)        # self-similarities

    sim = jnp.dot(xn.astype(matmul_dtype), dnt_ref[...],          # MXU, f32 accum
                  preferred_element_type=jnp.float32)             # (BT, M)
    s = sim + bias_ref[...]                                       # + ep*log(dict_probs)

    bt, m = s.shape
    col = lax.broadcasted_iota(jnp.int32, (bt, m), 1)
    col_f = col.astype(jnp.float32)
    out_pos = lax.broadcasted_iota(jnp.int32, (bt, k), 1)
    topv = jnp.zeros((bt, k), jnp.float32)
    topi = jnp.zeros((bt, k), jnp.int32)
    # Iterative top-k while sims sit in VMEM: k rounds of (max, first-argmax, mask).
    for t in range(k):
        mx = jnp.max(s, axis=1, keepdims=True)                    # (BT, 1)
        am_f = jnp.max(jnp.where(s == mx, -col_f, -jnp.inf),
                       axis=1, keepdims=True)                     # -(first argmax)
        am = (-am_f).astype(jnp.int32)                            # (BT, 1)
        topv = jnp.where(out_pos == t, mx, topv)
        topi = jnp.where(out_pos == t, am, topi)
        s = jnp.where(col == am, -jnp.inf, s)
    topv_ref[...] = topv
    topi_ref[...] = topi


# ---------------- kernel G: global dictionary Gram matrix -------------------
def _gram_kernel(dn_ref, dnt_ref, g_ref):
    g_ref[...] = jnp.dot(dn_ref[...], dnt_ref[...],
                         preferred_element_type=jnp.float32)      # (MT, M)


# ---- kernel C: approximate NNK (ISTA) + in-kernel power-iteration eta ------
def _nnk_solve_kernel(ata_ref, b_ref, ssq_ref, x_ref, err_ref, *,
                      num_iter, x_tol, power_iters):
    ata = ata_ref[...]                                            # (k, k, BT), symmetric
    b = b_ref[...]                                                # (k, BT)
    ssq = jnp.maximum(ssq_ref[...], 1e-12)                        # (1, BT)
    k = b.shape[0]

    def matvec(x):                                                # (k,BT) -> (k,BT)
        # ax[i,:] = sum_j AtA[i,j] * x[j,:]; tree-summed VPU MACs (AtA symmetric).
        terms = [ata[j] * x[j:j + 1, :] for j in range(k)]
        while len(terms) > 1:
            nxt = [terms[i] + terms[i + 1] for i in range(0, len(terms) - 1, 2)]
            if len(terms) % 2:
                nxt.append(terms[-1])
            terms = nxt
        return terms[0]

    # Step size: lane-parallel power iteration (replaces batched eigvalsh).
    v = jnp.ones_like(b)
    for _ in range(power_iters):
        w = matvec(v)
        v = w * lax.rsqrt(jnp.maximum(jnp.sum(w * w, axis=0, keepdims=True), 1e-30))
    lam = jnp.sum(v * matvec(v), axis=0, keepdims=True)           # Rayleigh ~ lambda_max
    eta = 1.0 / jnp.maximum(lam, 1e-12)                           # (1, BT)

    def body(_, x):
        grad = b - matvec(x)
        return jnp.clip(x + eta * grad, 0.0, b)                   # clamp(min=0, max=b)

    x = lax.fori_loop(0, num_iter, body, b, unroll=4)             # x_init = b
    x = jnp.where(x < x_tol, 0.0, x)                              # x_opt[x_opt < tol] = 0

    ax = matvec(x)
    raw = -2.0 * jnp.sum(x * (b - 0.5 * ax), axis=0, keepdims=True)   # (1, BT)
    err_ref[...] = (ssq + raw) / ssq

    l1 = jnp.maximum(jnp.sum(jnp.abs(x), axis=0, keepdims=True), 1e-12)
    x_ref[...] = x / l1                                           # F.normalize(p=1)


# ---------------- kernel I: interpolation (B, M) @ (M, D) -------------------
def _interp_kernel(w_ref, atoms_ref, out_ref):
    out_ref[...] = jnp.dot(w_ref[...], atoms_ref[...],
                           preferred_element_type=jnp.float32)    # (BT, D)


# --------------- hoisted (cached) dictionary preprocessing ------------------
def nnk_ec_prepare_dictionary(dictionary_atoms, dict_probs, *, ep=0.01,
                              matmul_dtype=jnp.bfloat16):
    """One-time preprocessing: normalized dictionary, EC bias and Gram matrix.

    With update_dict=False the dictionary is static, so this is computed once
    and reused by every forward call (saves an M*M*D MXU matmul per step).
    """
    f32 = jnp.float32
    atoms = dictionary_atoms.astype(f32)
    M, D = atoms.shape
    dict_norm = atoms / jnp.maximum(
        jnp.linalg.norm(atoms, axis=1, keepdims=True), 1e-12)
    dn_m = dict_norm.astype(matmul_dtype)                         # (M, D)
    dnt_m = dn_m.T                                                # (D, M)
    bias = (ep * jnp.log(dict_probs.astype(f32))).reshape(1, M)

    m_tile = _pick_tile(M)
    gram = pl.pallas_call(
        _gram_kernel,
        grid=(M // m_tile,),
        in_specs=[pl.BlockSpec((m_tile, D), lambda i: (i, 0)),
                  pl.BlockSpec((D, M), lambda i: (0, 0))],
        out_specs=pl.BlockSpec((m_tile, M), lambda i: (i, 0)),
        out_shape=jax.ShapeDtypeStruct((M, M), f32),
        compiler_params=_compiler_params(),
    )(dn_m, dnt_m)

    atoms_m = atoms.astype(matmul_dtype)                          # un-normalized (interp)
    return atoms_m, dnt_m, bias, gram


# --------------------------------- forward ----------------------------------
def nnk_ec_means_forward(batch_data, atoms_m, dnt_m, bias, gram, *,
                         n_nonzero_coefs, optim_itr=100, optim_tol=1e-6,
                         power_iters=8, b_tile=None,
                         matmul_dtype=jnp.bfloat16):
    """NNK_EC_Means.forward with n_classes=None, update_dict=False, warm_up=True.

    Returns (batch_data_norm, interpolated, label_interpolated, x_opt,
             indices, error) -- same tuple as the PyTorch module.
    """
    f32 = jnp.float32
    B, D = batch_data.shape
    M = dnt_m.shape[1]
    k = n_nonzero_coefs

    # Tile selection: bigger tiles fill the v6e/v7x 2x256^2 MXU and get closer
    # to the HBM roofline; keep >= 2 grid steps when possible for megacore.
    if b_tile is None:
        b_tile = 512 if B >= 1024 else (256 if B >= 512 else 128)
    B_pad = ((B + b_tile - 1) // b_tile) * b_tile
    x_in = batch_data.astype(f32)
    if B_pad != B:
        # Pad by replicating row 0 so padded rows are well-conditioned (no
        # ssq=0 -> NaN in the error term); they are sliced off before return.
        x_in = jnp.concatenate(
            [x_in, jnp.broadcast_to(x_in[:1], (B_pad - B, D))], axis=0)
    n_bt = B_pad // b_tile
    c_tile = 256 if B_pad % 256 == 0 else 128                     # >=2 lane blocks/step
    n_ct = B_pad // c_tile

    cp = _compiler_params()

    # --- kernel A: normalize + similarity + bias + ssq + fused top-k --------
    xn, topv, topi, ssq = pl.pallas_call(
        functools.partial(_encode_kernel, matmul_dtype=matmul_dtype),
        grid=(n_bt,),
        in_specs=[pl.BlockSpec((b_tile, D), lambda i: (i, 0)),
                  pl.BlockSpec((D, M), lambda i: (0, 0)),
                  pl.BlockSpec((1, M), lambda i: (0, 0))],
        out_specs=[pl.BlockSpec((b_tile, D), lambda i: (i, 0)),
                   pl.BlockSpec((b_tile, k), lambda i: (i, 0)),
                   pl.BlockSpec((b_tile, k), lambda i: (i, 0)),
                   pl.BlockSpec((b_tile, 1), lambda i: (i, 0))],
        out_shape=[jax.ShapeDtypeStruct((B_pad, D), f32),
                   jax.ShapeDtypeStruct((B_pad, k), f32),
                   jax.ShapeDtypeStruct((B_pad, k), jnp.int32),
                   jax.ShapeDtypeStruct((B_pad, 1), f32)],
        compiler_params=cp,
    )(x_in, dnt_m, bias)

    # --- glue: AtA gather from the cached Gram, directly lane-dense ---------
    # TODO(synk): full fusion of this gather into kernel C via scalar-prefetched
    # indices + in-kernel row DMAs of G would remove this last HBM round trip.
    idx_t = topi.T                                                # (k, B_pad)
    ata_t = gram[idx_t[:, None, :], idx_t[None, :, :]]            # (k, k, B_pad)
    b_t = topv.T                                                  # (k, B_pad)
    ssq_t = ssq.T                                                 # (1, B_pad)

    # --- kernel C: power-iteration eta + ISTA + error + L1 normalization ----
    x_t, err_t = pl.pallas_call(
        functools.partial(_nnk_solve_kernel, num_iter=optim_itr,
                          x_tol=optim_tol, power_iters=power_iters),
        grid=(n_ct,),
        in_specs=[pl.BlockSpec((k, k, c_tile), lambda i: (0, 0, i)),
                  pl.BlockSpec((k, c_tile), lambda i: (0, i)),
                  pl.BlockSpec((1, c_tile), lambda i: (0, i))],
        out_specs=[pl.BlockSpec((k, c_tile), lambda i: (0, i)),
                   pl.BlockSpec((1, c_tile), lambda i: (0, i))],
        out_shape=[jax.ShapeDtypeStruct((k, B_pad), f32),
                   jax.ShapeDtypeStruct((1, B_pad), f32)],
        compiler_params=cp,
    )(ata_t, b_t, ssq_t)

    x_opt = x_t.T                                                 # (B_pad, k)
    err = err_t[0]                                                # (B_pad,)

    # --- interpolation ------------------------------------------------------
    if M <= 4096:
        # Small/medium M: dense coefficient slab + one MXU matmul.
        rows = jnp.arange(B_pad)[:, None]
        w = jnp.zeros((B_pad, M), f32).at[rows, topi].set(x_opt)
        interp = pl.pallas_call(
            _interp_kernel,
            grid=(n_bt,),
            in_specs=[pl.BlockSpec((b_tile, M), lambda i: (i, 0)),
                      pl.BlockSpec((M, D), lambda i: (0, 0))],
            out_specs=pl.BlockSpec((b_tile, D), lambda i: (i, 0)),
            out_shape=jax.ShapeDtypeStruct((B_pad, D), f32),
            compiler_params=cp,
        )(w.astype(matmul_dtype), atoms_m)
    else:
        # Huge M: avoid the O(B*M) slab; sparse k-atom combination instead.
        # TODO(synk): fuse this as a scalar-prefetch gather-accumulate epilogue
        # of kernel C so the atom gather never goes through XLA/HBM.
        interp = jnp.einsum("bk,bkd->bd", x_opt.astype(matmul_dtype),
                            atoms_m[topi], preferred_element_type=f32)

    # TODO(synk): the stateful training-side bookkeeping of forward()
    # (data_cache / influence_cache sparse-mm updates, error-based buffer,
    # update_dict matrix inverse) only mutates module state with the default
    # flags and does not affect the returned tensors; not kernelized here.
    return (xn[:B], interp[:B], None, x_opt[:B], topi[:B], err[:B])


# --------- EC bookkeeping (scatter-add into counts/weights), warm_up --------
def nnk_ec_update_counts(dict_counts, dict_weights, x_opt, indices):
    x_flat = x_opt.reshape(-1)
    idx_flat = indices.reshape(-1)
    nz = x_flat != 0.0
    dict_counts = dict_counts.at[idx_flat].add(nz.astype(jnp.int32))
    dict_weights = dict_weights.at[idx_flat].add(jnp.where(nz, x_flat, 0.0))
    return dict_counts, dict_weights      # warm_up=True: dict_probs unchanged


# ----------------------------- pure-JAX reference ----------------------------
def _reference_forward(batch_data, dictionary_atoms, dict_probs, *,
                       k, ep, num_iter, x_tol, power_iters, matmul_dtype):
    f32 = jnp.float32
    xn = batch_data / jnp.maximum(
        jnp.linalg.norm(batch_data, axis=1, keepdims=True), 1e-12)
    dn = dictionary_atoms / jnp.maximum(
        jnp.linalg.norm(dictionary_atoms, axis=1, keepdims=True), 1e-12)
    dn_m = dn.astype(matmul_dtype)
    sims = jnp.dot(xn.astype(matmul_dtype), dn_m.T, preferred_element_type=f32)
    sims = sims + ep * jnp.log(dict_probs)[None, :]
    b, idx = lax.top_k(sims, k)
    gram = jnp.dot(dn_m, dn_m.T, preferred_element_type=f32)
    ata = gram[idx[:, :, None], idx[:, None, :]]                  # (B, k, k)

    # Same power-iteration step-size rule as the Pallas kernel.
    v = jnp.ones_like(b)
    for _ in range(power_iters):
        w = jnp.einsum("bij,bj->bi", ata, v, preferred_element_type=f32)
        v = w / jnp.maximum(jnp.linalg.norm(w, axis=1, keepdims=True), 1e-30)
    lam = jnp.einsum("bi,bij,bj->b", v, ata, v, preferred_element_type=f32)
    eta = (1.0 / jnp.maximum(lam, 1e-12))[:, None]

    def body(_, x):
        ax = jnp.einsum("bij,bj->bi", ata, x, preferred_element_type=f32)
        return jnp.clip(x + eta * (b - ax), 0.0, b)

    x = lax.fori_loop(0, num_iter, body, b)
    x = jnp.where(x < x_tol, 0.0, x)
    ax = jnp.einsum("bij,bj->bi", ata, x, preferred_element_type=f32)
    err = -2.0 * jnp.sum(x * (b - 0.5 * ax), axis=1)
    ssq = jnp.sum(xn * xn, axis=1)
    err = (ssq + err) / ssq
    xo = x / jnp.maximum(jnp.sum(jnp.abs(x), axis=1, keepdims=True), 1e-12)
    atoms_sel = dictionary_atoms[idx].astype(matmul_dtype)
    interp = jnp.einsum("bk,bkd->bd", xo.astype(matmul_dtype), atoms_sel,
                        preferred_element_type=f32)
    return xn, interp, xo, idx, err


if __name__ == "__main__":
    # Small shapes consistent with the module: B samples, feature dim D,
    # M dictionary atoms, k nonzero coefficients per sample.
    B, D, M, K = 256, 128, 256, 8
    EP, N_ITER, X_TOL, N_POWER = 0.01, 100, 1e-6, 8
    MATMUL_DTYPE = jnp.bfloat16       # MXU inputs; accumulation stays f32

    key = jax.random.PRNGKey(0)
    k1, k2 = jax.random.split(key)
    batch_data = jax.random.normal(k1, (B, D), dtype=jnp.float32)
    dictionary_atoms = jax.random.normal(k2, (M, D), dtype=jnp.float32)
    dict_probs = jnp.ones((M,), dtype=jnp.float32)                # NNK_EC_Means init
    dict_counts = jnp.zeros((M,), dtype=jnp.int32)
    dict_weights = jnp.zeros((M,), dtype=jnp.float32)

    # One-time dictionary preprocessing (hoisted out of the per-batch forward).
    prep = jax.jit(functools.partial(nnk_ec_prepare_dictionary,
                                     ep=EP, matmul_dtype=MATMUL_DTYPE))
    dict_state = jax.block_until_ready(prep(dictionary_atoms, dict_probs))

    fwd = jax.jit(functools.partial(
        nnk_ec_means_forward, n_nonzero_coefs=K, optim_itr=N_ITER,
        optim_tol=X_TOL, power_iters=N_POWER, matmul_dtype=MATMUL_DTYPE))
    out = jax.block_until_ready(fwd(batch_data, *dict_state))
    xn, interp, label_interp, x_opt, indices, error = out

    # EC bookkeeping (scatter-add of counts / weights) -- plain-JAX glue.
    dict_counts, dict_weights = nnk_ec_update_counts(
        dict_counts, dict_weights, x_opt, indices)

    # Correctness check against a pure-JAX reference using the same precision
    # policy (bf16 MXU inputs, f32 accumulation) and the same step-size rule.
    r_xn, r_interp, r_xo, r_idx, r_err = _reference_forward(
        batch_data, dictionary_atoms, dict_probs,
        k=K, ep=EP, num_iter=N_ITER, x_tol=X_TOL, power_iters=N_POWER,
        matmul_dtype=MATMUL_DTYPE)

    assert label_interp is None
    assert x_opt.shape == (B, K) and indices.shape == (B, K)
    assert interp.shape == (B, D) and error.shape == (B,)
    assert bool(jnp.all(jnp.isfinite(x_opt))) and bool(jnp.all(jnp.isfinite(error)))
    assert jnp.allclose(xn, r_xn, rtol=1e-4, atol=1e-5)
    assert jnp.allclose(x_opt, r_xo, rtol=2e-3, atol=2e-3)
    assert jnp.allclose(interp, r_interp, rtol=1e-2, atol=1e-2)
    assert jnp.allclose(error, r_err, rtol=5e-3, atol=5e-3)
    jax.block_until_ready((dict_counts, dict_weights))

    print("KERNEL_OK")
</pallas_src>

<mosaic_0001>
module attributes {stable_mosaic.version = 11 : i64} {
  func.func @_gram_kernel(%arg0: i32, %arg1: memref<256x128xbf16, #tpu.memory_space<vmem>>, %arg2: memref<128x256xbf16, #tpu.memory_space<vmem>>, %arg3: memref<256x256xf32, #tpu.memory_space<vmem>>) attributes {dimension_semantics = [#tpu.dimension_semantics<parallel>], iteration_bounds = array<i64: 1>, scalar_prefetch = 0 : i64, scratch_operands = 0 : i64, tpu.core_type = #tpu.core_type<tc>, window_params = [{transform_indices = @transform_0, window_bounds = array<i64: 256, 128>}, {pipeline_mode = #tpu.pipeline_mode<synchronous>, transform_indices = @transform_1, window_bounds = array<i64: 128, 256>}, {transform_indices = @transform_2, window_bounds = array<i64: 256, 256>}]} {
    %c0 = arith.constant 0 : index
    %c0_0 = arith.constant 0 : index
    %0 = vector.load %arg1[%c0, %c0_0] : memref<256x128xbf16, #tpu.memory_space<vmem>>, vector<256x128xbf16>
    %c0_1 = arith.constant 0 : index
    %c0_2 = arith.constant 0 : index
    %1 = vector.load %arg2[%c0_1, %c0_2] : memref<128x256xbf16, #tpu.memory_space<vmem>>, vector<128x256xbf16>
    %cst = arith.constant dense<0.000000e+00> : vector<256x256xf32>
    %2 = tpu.matmul %0, %1, %cst {dimension_numbers = #tpu.dot_dimension_numbers<[1], [0], [0], [1], [0, 0, 1, 1], [], []>} : vector<256x128xbf16>, vector<128x256xbf16>, vector<256x256xf32> -> vector<256x256xf32>
    %c0_3 = arith.constant 0 : index
    %c0_4 = arith.constant 0 : index
    %3 = vector.load %arg3[%c0_3, %c0_4] : memref<256x256xf32, #tpu.memory_space<vmem>>, vector<256x256xf32>
    tpu.vector_store %arg3[%c0_3, %c0_4], %2 {strides = array<i32>} : memref<256x256xf32, #tpu.memory_space<vmem>>, vector<256x256xf32>,
    return
  }
  func.func @transform_0(%arg0: i32) -> (i32, i32) {
    %c0_i32 = arith.constant 0 : i32
    %c0_i32_0 = arith.constant 0 : i32
    return %arg0, %c0_i32 : i32, i32
  }
  func.func @transform_1(%arg0: i32) -> (i32, i32) {
    %c0_i32 = arith.constant 0 : i32
    %c0_i32_0 = arith.constant 0 : i32
    %c0_i32_1 = arith.constant 0 : i32
    return %c0_i32, %c0_i32_0 : i32, i32
  }
  func.func @transform_2(%arg0: i32) -> (i32, i32) {
    %c0_i32 = arith.constant 0 : i32
    %c0_i32_0 = arith.constant 0 : i32
    return %arg0, %c0_i32 : i32, i32
  }
}

</mosaic_0001>

<llo_original>
// kernel: nnk_ec_prepare_dictionary.1
$region0: #{nnk_ec_prepare_dictionary.1}
  #allocation0 [shape = 'u32[]', space=smem, size = 0x4, offset = 0x4, fixed_abs, tag = 'smem constant byte address 0x4 - core index']
  #allocation1 [shape = 'u32[144,128]{1,0:T(1,128)}', space=vmem, size = 0x12000, scoped, tag = 'internal scratch']
  %s0 = inlined_call_operand.vmem [shape: bf16[256,128], index: 0, kind: input, shape index: {}]
  %s1 = inlined_call_operand.vmem [shape: bf16[128,256], index: 1, kind: input, shape index: {}]
  %s2 = inlined_call_operand.hbm [shape: f32[256,256], index: 2, kind: output, shape index: {}]
  %s3 = sld [smem:[#allocation0]]
  $region18: #{nnk_ec_prepare_dictionary.1} parent=0
    _
  %s5 = ssub.s32 1, %s3
  %s6 = scalar_select 0, %s5, %s3
  $region1: #{nnk_ec_prepare_dictionary.1} parent=0
    #allocation2 [shape = 'u8[262144]{0}', space=vmem, size = 0x40000, scoped, tag = 'output window, operand 0, single buffered']
    #allocation3 [shape = 's32[1]{0}', space=sflag, size = 0x4, scoped, tag = 'scoped memory for nnk_ec_prepare_dictionary.1']
    %7 = vsyncpa [#allocation3], 0
    // Predicated region
    $region2: #{nnk_ec_prepare_dictionary.1} parent=1 // pred_check
      _
    $region3: #{nnk_ec_prepare_dictionary.1} parent=1 // pred_check_branch
      %9 = sbr.rel (0) target = $region5
    $region4: #{nnk_ec_prepare_dictionary.1} parent=1 // pred_region
      _
    $region5: #{nnk_ec_prepare_dictionary.1} parent=1 // pred_fallthru
      _
    // Predicated region
    $region6: #{nnk_ec_prepare_dictionary.1} parent=1 // pred_check
      _
    $region7: #{nnk_ec_prepare_dictionary.1} parent=1 // pred_check_branch
      %11 = sbr.rel (0) target = $region9
    $region8: #{nnk_ec_prepare_dictionary.1} parent=1 // pred_region
      _
    $region9: #{nnk_ec_prepare_dictionary.1} parent=1 // pred_fallthru
      _
    %v13 = vld [vmem:[%s0] sm:$0xf]
    %v14 = vld [vmem:[%s0 + $0x4] sm:$0xf]
    %v15 = vld [vmem:[%s0 + $0x8] sm:$0xf]
    %v16 = vld [vmem:[%s0 + $0xc] sm:$0xf]
    %v17 = vld [vmem:[%s0 + $0x10] sm:$0xf]
    %v18 = vld [vmem:[%s0 + $0x14] sm:$0xf]
    %v19 = vld [vmem:[%s0 + $0x18] sm:$0xf]
    %v20 = vld [vmem:[%s0 + $0x1c] sm:$0xf]
    %v21 = vld [vmem:[%s0 + $0x20] sm:$0xf]
    %v22 = vld [vmem:[%s0 + $0x24] sm:$0xf]
    %v23 = vld [vmem:[%s0 + $0x28] sm:$0xf]
    %v24 = vld [vmem:[%s0 + $0x2c] sm:$0xf]
    %v25 = vld [vmem:[%s0 + $0x30] sm:$0xf]
    %v26 = vld [vmem:[%s0 + $0x34] sm:$0xf]
    %v27 = vld [vmem:[%s0 + $0x38] sm:$0xf]
    %v28 = vld [vmem:[%s0 + $0x3c] sm:$0xf]
    %v29 = vld [vmem:[%s0 + $0x40] sm:$0xf]
    %v30 = vld [vmem:[%s0 + $0x44] sm:$0xf]
    %v31 = vld [vmem:[%s0 + $0x48] sm:$0xf]
    %v32 = vld [vmem:[%s0 + $0x4c] sm:$0xf]
    %v33 = vld [vmem:[%s0 + $0x50] sm:$0xf]
    %v34 = vld [vmem:[%s0 + $0x54] sm:$0xf]
    %v35 = vld [vmem:[%s0 + $0x58] sm:$0xf]
    %v36 = vld [vmem:[%s0 + $0x5c] sm:$0xf]
    %v37 = vld [vmem:[%s0 + $0x60] sm:$0xf]
    %v38 = vld [vmem:[%s0 + $0x64] sm:$0xf]
    %v39 = vld [vmem:[%s0 + $0x68] sm:$0xf]
    %v40 = vld [vmem:[%s0 + $0x6c] sm:$0xf]
    %v41 = vld [vmem:[%s0 + $0x70] sm:$0xf]
    %v42 = vld [vmem:[%s0 + $0x74] sm:$0xf]
    %v43 = vld [vmem:[%s0 + $0x78] sm:$0xf]
    %v44 = vld [vmem:[%s0 + $0x7c] sm:$0xf]
    %v45 = vld [vmem:[%s1] sm:$0xff]
    %v46 = vld [vmem:[%s1 + $0x8] sm:$0xff]
    %v47 = vld [vmem:[%s1 + $0x10] sm:$0xff]
    %v48 = vld [vmem:[%s1 + $0x18] sm:$0xff]
    %v49 = vld [vmem:[%s1 + $0x20] sm:$0xff]
    %v50 = vld [vmem:[%s1 + $0x28] sm:$0xff]
    %v51 = vld [vmem:[%s1 + $0x30] sm:$0xff]
    %v52 = vld [vmem:[%s1 + $0x38] sm:$0xff]
    %v53 = vld [vmem:[%s1 + $0x40] sm:$0xff]
    %v54 = vld [vmem:[%s1 + $0x48] sm:$0xff]
    %v55 = vld [vmem:[%s1 + $0x50] sm:$0xff]
    %v56 = vld [vmem:[%s1 + $0x58] sm:$0xff]
    %v57 = vld [vmem:[%s1 + $0x60] sm:$0xff]
    %v58 = vld [vmem:[%s1 + $0x68] sm:$0xff]
    %v59 = vld [vmem:[%s1 + $0x70] sm:$0xff]
    %v60 = vld [vmem:[%s1 + $0x78] sm:$0xff]
    %v93 = vunpack.c.l.b16 %v13
    %v94 = vunpack.c.l.b16 %v14
    %v95 = vunpack.c.l.b16 %v15
    %v96 = vunpack.c.l.b16 %v16
    %v97 = vunpack.c.l.b16 %v17
    %v98 = vunpack.c.l.b16 %v18
    %v99 = vunpack.c.l.b16 %v19
    %v100 = vunpack.c.l.b16 %v20
    %v101 = vunpack.c.l.b16 %v21
    %v102 = vunpack.c.l.b16 %v22
    %v103 = vunpack.c.l.b16 %v23
    %v104 = vunpack.c.l.b16 %v24
    %v105 = vunpack.c.l.b16 %v25
    %v106 = vunpack.c.l.b16 %v26
    %v107 = vunpack.c.l.b16 %v27
    %v108 = vunpack.c.l.b16 %v28
    %v109 = vunpack.c.l.b16 %v29
    %v110 = vunpack.c.l.b16 %v30
    %v111 = vunpack.c.l.b16 %v31
    %v112 = vunpack.c.l.b16 %v32
    %v113 = vunpack.c.l.b16 %v33
    %v114 = vunpack.c.l.b16 %v34
    %v115 = vunpack.c.l.b16 %v35
    %v116 = vunpack.c.l.b16 %v36
    %v117 = vunpack.c.l.b16 %v37
    %v118 = vunpack.c.l.b16 %v38
    %v119 = vunpack.c.l.b16 %v39
    %v120 = vunpack.c.l.b16 %v40
    %v121 = vunpack.c.l.b16 %v41
    %v122 = vunpack.c.l.b16 %v42
    %v123 = vunpack.c.l.b16 %v43
    %v124 = vunpack.c.l.b16 %v44
    %v125 = vpack.c.b16 %v94, %v93
    %v126 = vpack.c.b16 %v96, %v95
    %v127 = vpack.c.b16 %v98, %v97
    %v128 = vpack.c.b16 %v100, %v99
    %v129 = vpack.c.b16 %v102, %v101
    %v130 = vpack.c.b16 %v104, %v103
    %v131 = vpack.c.b16 %v106, %v105
    %v132 = vpack.c.b16 %v108, %v107
    %v133 = vpack.c.b16 %v110, %v109
    %v134 = vpack.c.b16 %v112, %v111
    %v135 = vpack.c.b16 %v114, %v113
    %v136 = vpack.c.b16 %v116, %v115
    %v137 = vpack.c.b16 %v118, %v117
    %v138 = vpack.c.b16 %v120, %v119
    %v139 = vpack.c.b16 %v122, %v121
    %v140 = vpack.c.b16 %v124, %v123
    %v173 = vunpack.c.l.b16 %v45
    %v174 = vunpack.c.h.b16 %v45
    %v175 = vunpack.c.l.b16 %v46
    %v176 = vunpack.c.h.b16 %v46
    %v177 = vunpack.c.l.b16 %v47
    %v178 = vunpack.c.h.b16 %v47
    %v179 = vunpack.c.l.b16 %v48
    %v180 = vunpack.c.h.b16 %v48
    %v181 = vunpack.c.l.b16 %v49
    %v182 = vunpack.c.h.b16 %v49
    %v183 = vunpack.c.l.b16 %v50
    %v184 = vunpack.c.h.b16 %v50
    %v185 = vunpack.c.l.b16 %v51
    %v186 = vunpack.c.h.b16 %v51
    %v187 = vunpack.c.l.b16 %v52
    %v188 = vunpack.c.h.b16 %v52
    %v189 = vunpack.c.l.b16 %v53
    %v190 = vunpack.c.h.b16 %v53
    %v191 = vunpack.c.l.b16 %v54
    %v192 = vunpack.c.h.b16 %v54
    %v193 = vunpack.c.l.b16 %v55
    %v194 = vunpack.c.h.b16 %v55
    %v195 = vunpack.c.l.b16 %v56
    %v196 = vunpack.c.h.b16 %v56
    %v197 = vunpack.c.l.b16 %v57
    %v198 = vunpack.c.h.b16 %v57
    %v199 = vunpack.c.l.b16 %v58
    %v200 = vunpack.c.h.b16 %v58
    %v201 = vunpack.c.l.b16 %v59
    %v202 = vunpack.c.h.b16 %v59
    %v203 = vunpack.c.l.b16 %v60
    %v204 = vunpack.c.h.b16 %v60
    %v205 = vpack.c.b16 %v175, %v173
    %v206 = vpack.c.b16 %v176, %v174
    %v207 = vpack.c.b16 %v179, %v177
    %v208 = vpack.c.b16 %v180, %v178
    %v209 = vpack.c.b16 %v183, %v181
    %v210 = vpack.c.b16 %v184, %v182
    %v211 = vpack.c.b16 %v187, %v185
    %v212 = vpack.c.b16 %v188, %v186
    %v213 = vpack.c.b16 %v191, %v189
    %v214 = vpack.c.b16 %v192, %v190
    %v215 = vpack.c.b16 %v195, %v193
    %v216 = vpack.c.b16 %v196, %v194
    %v217 = vpack.c.b16 %v199, %v197
    %v218 = vpack.c.b16 %v200, %v198
    %v219 = vpack.c.b16 %v203, %v201
    %v220 = vpack.c.b16 %v204, %v202
    %237 = vmatprep.subr.bf16.mxu0 %v206
    %238 = vmatpush1.bf16.msra.mxu0 %v205
    %239 = vmatprep.subr.bf16.mxu0 %v208
    %240 = vmatpush1.bf16.msra.mxu0 %v207
    %241 = vmatprep.subr.bf16.mxu0 %v210
    %242 = vmatpush1.bf16.msra.mxu0 %v209
    %243 = vmatprep.subr.bf16.mxu0 %v212
    %244 = vmatpush1.bf16.msra.mxu0 %v211
    %245 = vmatprep.subr.bf16.mxu0 %v214
    %246 = vmatpush1.bf16.msra.mxu0 %v213
    %247 = vmatprep.subr.bf16.mxu0 %v216
    %248 = vmatpush1.bf16.msra.mxu0 %v215
    %249 = vmatprep.subr.bf16.mxu0 %v218
    %250 = vmatpush1.bf16.msra.mxu0 %v217
    %251 = vmatprep.subr.bf16.mxu0 %v220
    %252 = vmatpush1.bf16.msra.mxu0 %v219
    %253 = vmatprep.subr.bf16.mxu0 0
    %254 = vmatpush1.bf16.msra.mxu0 0
    %255 = vmatprep.subr.bf16.mxu0 0
    %256 = vmatpush1.bf16.msra.mxu0 0
    %257 = vmatprep.subr.bf16.mxu0 0
    %258 = vmatpush1.bf16.msra.mxu0 0
    %259 = vmatprep.subr.bf16.mxu0 0
    %260 = vmatpush1.bf16.msra.mxu0 0
    %261 = vmatprep.subr.bf16.mxu0 0
    %262 = vmatpush1.bf16.msra.mxu0 0
    %263 = vmatprep.subr.bf16.mxu0 0
    %264 = vmatpush1.bf16.msra.mxu0 0
    %265 = vmatprep.subr.bf16.mxu0 0
    %266 = vmatpush1.bf16.msra.mxu0 0
    %267 = vmatprep.subr.bf16.mxu0 0
    %268 = vmatpush1.bf16.msra.mxu0 0
    %269 = vmatprep.mubr.bf16.mxu0 0
    %270 = vmatmul.mubr.bf16.gmra.mrb[0].mxu0 %v125
    %v271 = vpop.f32.mrb[0].mxu0
    %v272 = vadd.f32 0.0, %v271
    %v273 = vpop.f32.mrb[0].mxu0
    %v274 = vadd.f32 0.0, %v273
    %v275 = vpop.f32.mrb[0].mxu0
    %v276 = vadd.f32 0.0, %v275
    %v277 = vpop.f32.mrb[0].mxu0
    %v278 = vadd.f32 0.0, %v277
    %279 = vmatprep.mubr.bf16.mxu0 0
    %280 = vmatmul.mubr.bf16.gmra.mrb[0].mxu0 %v126
    %v281 = vpop.f32.mrb[0].mxu0
    %v282 = vadd.f32 0.0, %v281
    %v283 = vpop.f32.mrb[0].mxu0
    %v284 = vadd.f32 0.0, %v283
    %v285 = vpop.f32.mrb[0].mxu0
    %v286 = vadd.f32 0.0, %v285
    %v287 = vpop.f32.mrb[0].mxu0
    %v288 = vadd.f32 0.0, %v287
    %289 = vmatprep.mubr.bf16.mxu0 0
    %290 = vmatmul.mubr.bf16.gmra.mrb[0].mxu0 %v127
    %v291 = vpop.f32.mrb[0].mxu0
    %v292 = vadd.f32 0.0, %v291
    %v293 = vpop.f32.mrb[0].mxu0
    %v294 = vadd.f32 0.0, %v293
    %v295 = vpop.f32.mrb[0].mxu0
    %v296 = vadd.f32 0.0, %v295
    %v297 = vpop.f32.mrb[0].mxu0
    %v298 = vadd.f32 0.0, %v297
    %299 = vmatprep.mubr.bf16.mxu0 0
    %300 = vmatmul.mubr.bf16.gmra.mrb[0].mxu0 %v128
    %v301 = vpop.f32.mrb[0].mxu0
    %v302 = vadd.f32 0.0, %v301
    %v303 = vpop.f32.mrb[0].mxu0
    %v304 = vadd.f32 0.0, %v303
    %v305 = vpop.f32.mrb[0].mxu0
    %v306 = vadd.f32 0.0, %v305
    %v307 = vpop.f32.mrb[0].mxu0
    %v308 = vadd.f32 0.0, %v307
    %309 = vmatprep.mubr.bf16.mxu0 0
    %310 = vmatmul.mubr.bf16.gmra.mrb[0].mxu0 %v129
    %v311 = vpop.f32.mrb[0].mxu0
    %v312 = vadd.f32 0.0, %v311
    %v313 = vpop.f32.mrb[0].mxu0
    %v314 = vadd.f32 0.0, %v313
    %v315 = vpop.f32.mrb[0].mxu0
    %v316 = vadd.f32 0.0, %v315
    %v317 = vpop.f32.mrb[0].mxu0
    %v318 = vadd.f32 0.0, %v317
    %319 = vmatprep.mubr.bf16.mxu0 0
    %320 = vmatmul.mubr.bf16.gmra.mrb[0].mxu0 %v130
    %v321 = vpop.f32.mrb[0].mxu0
    %v322 = vadd.f32 0.0, %v321
    %v323 = vpop.f32.mrb[0].mxu0
    %v324 = vadd.f32 0.0, %v323
    %v325 = vpop.f32.mrb[0].mxu0
    %v326 = vadd.f32 0.0, %v325
    %v327 = vpop.f32.mrb[0].mxu0
    %v328 = vadd.f32 0.0, %v327
    %329 = vmatprep.mubr.bf16.mxu0 0
    %330 = vmatmul.mubr.bf16.gmra.mrb[0].mxu0 %v131
    %v331 = vpop.f32.mrb[0].mxu0
    %v332 = vadd.f32 0.0, %v331
    %v333 = vpop.f32.mrb[0].mxu0
    %v334 = vadd.f32 0.0, %v333
    %v335 = vpop.f32.mrb[0].mxu0
    %v336 = vadd.f32 0.0, %v335
    %v337 = vpop.f32.mrb[0].mxu0
    %v338 = vadd.f32 0.0, %v337
    %339 = vmatprep.mubr.bf16.mxu0 0
    %340 = vmatmul.mubr.bf16.gmra.mrb[0].mxu0 %v132
    %v341 = vpop.f32.mrb[0].mxu0
    %v342 = vadd.f32 0.0, %v341
    %v343 = vpop.f32.mrb[0].mxu0
    %v344 = vadd.f32 0.0, %v343
    %v345 = vpop.f32.mrb[0].mxu0
    %v346 = vadd.f32 0.0, %v345
    %v347 = vpop.f32.mrb[0].mxu0
    %v348 = vadd.f32 0.0, %v347
    %349 = vmatprep.mubr.bf16.mxu0 0
    %350 = vmatmul.mubr.bf16.gmra.mrb[0].mxu0 %v133
    %v351 = vpop.f32.mrb[0].mxu0
    %v352 = vadd.f32 0.0, %v351
    %v353 = vpop.f32.mrb[0].mxu0
    %v354 = vadd.f32 0.0, %v353
    %v355 = vpop.f32.mrb[0].mxu0
    %v356 = vadd.f32 0.0, %v355
    %v357 = vpop.f32.mrb[0].mxu0
    %v358 = vadd.f32 0.0, %v357
    %359 = vmatprep.mubr.bf16.mxu0 0
    %360 = vmatmul.mubr.bf16.gmra.mrb[0].mxu0 %v134
    %v361 = vpop.f32.mrb[0].mxu0
    %v362 = vadd.f32 0.0, %v361
    %v363 = vpop.f32.mrb[0].mxu0
    %v364 = vadd.f32 0.0, %v363
    %v365 = vpop.f32.mrb[0].mxu0
    %v366 = vadd.f32 0.0, %v365
    %v367 = vpop.f32.mrb[0].mxu0
    %v368 = vadd.f32 0.0, %v367
    %369 = vmatprep.mubr.bf16.mxu0 0
    %370 = vmatmul.mubr.bf16.gmra.mrb[0].mxu0 %v135
    %v371 = vpop.f32.mrb[0].mxu0
    %v372 = vadd.f32 0.0, %v371
    %v373 = vpop.f32.mrb[0].mxu0
    %v374 = vadd.f32 0.0, %v373
    %v375 = vpop.f32.mrb[0].mxu0
    %v376 = vadd.f32 0.0, %v375
    %v377 = vpop.f32.mrb[0].mxu0
    %v378 = vadd.f32 0.0, %v377
    %379 = vmatprep.mubr.bf16.mxu0 0
    %380 = vmatmul.mubr.bf16.gmra.mrb[0].mxu0 %v136
    %v381 = vpop.f32.mrb[0].mxu0
    %v382 = vadd.f32 0.0, %v381
    %v383 = vpop.f32.mrb[0].mxu0
    %v384 = vadd.f32 0.0, %v383
    %v385 = vpop.f32.mrb[0].mxu0
    %v386 = vadd.f32 0.0, %v385
    %v387 = vpop.f32.mrb[0].mxu0
    %v388 = vadd.f32 0.0, %v387
    %389 = vmatprep.mubr.bf16.mxu0 0
    %390 = vmatmul.mubr.bf16.gmra.mrb[0].mxu0 %v137
    %v391 = vpop.f32.mrb[0].mxu0
    %v392 = vadd.f32 0.0, %v391
    %v393 = vpop.f32.mrb[0].mxu0
    %v394 = vadd.f32 0.0, %v393
    %v395 = vpop.f32.mrb[0].mxu0
    %v396 = vadd.f32 0.0, %v395
    %v397 = vpop.f32.mrb[0].mxu0
    %v398 = vadd.f32 0.0, %v397
    %399 = vmatprep.mubr.bf16.mxu0 0
    %400 = vmatmul.mubr.bf16.gmra.mrb[0].mxu0 %v138
    %v401 = vpop.f32.mrb[0].mxu0
    %v402 = vadd.f32 0.0, %v401
    %v403 = vpop.f32.mrb[0].mxu0
    %v404 = vadd.f32 0.0, %v403
    %v405 = vpop.f32.mrb[0].mxu0
    %v406 = vadd.f32 0.0, %v405
    %v407 = vpop.f32.mrb[0].mxu0
    %v408 = vadd.f32 0.0, %v407
    %409 = vmatprep.mubr.bf16.mxu0 0
    %410 = vmatmul.mubr.bf16.gmra.mrb[0].mxu0 %v139
    %v411 = vpop.f32.mrb[0].mxu0
    %v412 = vadd.f32 0.0, %v411
    %v413 = vpop.f32.mrb[0].mxu0
    %v414 = vadd.f32 0.0, %v413
    %v415 = vpop.f32.mrb[0].mxu0
    %v416 = vadd.f32 0.0, %v415
    %v417 = vpop.f32.mrb[0].mxu0
    %v418 = vadd.f32 0.0, %v417
    %419 = vmatprep.mubr.bf16.mxu0 0
    %420 = vmatmul.mubr.bf16.gmra.mrb[0].mxu0 %v140
    %v421 = vpop.f32.mrb[0].mxu0
    %v422 = vadd.f32 0.0, %v421
    %v423 = vpop.f32.mrb[0].mxu0
    %v424 = vadd.f32 0.0, %v423
    %v425 = vpop.f32.mrb[0].mxu0
    %v426 = vadd.f32 0.0, %v425
    %v427 = vpop.f32.mrb[0].mxu0
    %v428 = vadd.f32 0.0, %v427
    %429 = vdwg.mxu0
    %430 = vst [vmem:[#allocation2] sm:$0xff] %v272
    %431 = vst [vmem:[#allocation2 + $0x8] sm:$0xff] %v274
    %432 = vst [vmem:[#allocation2 + $0x10] sm:$0xff] %v276
    %433 = vst [vmem:[#allocation2 + $0x18] sm:$0xff] %v278
    %434 = vst [vmem:[#allocation2 + $0x20] sm:$0xff] %v282
    %435 = vst [vmem:[#allocation2 + $0x28] sm:$0xff] %v284
    %436 = vst [vmem:[#allocation2 + $0x30] sm:$0xff] %v286
    %437 = vst [vmem:[#allocation2 + $0x38] sm:$0xff] %v288
    %438 = vst [vmem:[#allocation2 + $0x40] sm:$0xff] %v292
    %439 = vst [vmem:[#allocation2 + $0x48] sm:$0xff] %v294
    %440 = vst [vmem:[#allocation2 + $0x50] sm:$0xff] %v296
    %441 = vst [vmem:[#allocation2 + $0x58] sm:$0xff] %v298
    %442 = vst [vmem:[#allocation2 + $0x60] sm:$0xff] %v302
    %443 = vst [vmem:[#allocation2 + $0x68] sm:$0xff] %v304
    %444 = vst [vmem:[#allocation2 + $0x70] sm:$0xff] %v306
    %445 = vst [vmem:[#allocation2 + $0x78] sm:$0xff] %v308
    %446 = vst [vmem:[#allocation2 + $0x80] sm:$0xff] %v312
    %447 = vst [vmem:[#allocation2 + $0x88] sm:$0xff] %v314
    %448 = vst [vmem:[#allocation2 + $0x90] sm:$0xff] %v316
    %449 = vst [vmem:[#allocation2 + $0x98] sm:$0xff] %v318
    %450 = vst [vmem:[#allocation2 + $0xa0] sm:$0xff] %v322
    %451 = vst [vmem:[#allocation2 + $0xa8] sm:$0xff] %v324
    %452 = vst [vmem:[#allocation2 + $0xb0] sm:$0xff] %v326
    %453 = vst [vmem:[#allocation2 + $0xb8] sm:$0xff] %v328
    %454 = vst [vmem:[#allocation2 + $0xc0] sm:$0xff] %v332
    %455 = vst [vmem:[#allocation2 + $0xc8] sm:$0xff] %v334
    %456 = vst [vmem:[#allocation2 + $0xd0] sm:$0xff] %v336
    %457 = vst [vmem:[#allocation2 + $0xd8] sm:$0xff] %v338
    %458 = vst [vmem:[#allocation2 + $0xe0] sm:$0xff] %v342
    %459 = vst [vmem:[#allocation2 + $0xe8] sm:$0xff] %v344
    %460 = vst [vmem:[#allocation2 + $0xf0] sm:$0xff] %v346
    %461 = vst [vmem:[#allocation2 + $0xf8] sm:$0xff] %v348
    %462 = vst [vmem:[#allocation2 + $0x100] sm:$0xff] %v352
    %463 = vst [vmem:[#allocation2 + $0x108] sm:$0xff] %v354
    %464 = vst [vmem:[#allocation2 + $0x110] sm:$0xff] %v356
    %465 = vst [vmem:[#allocation2 + $0x118] sm:$0xff] %v358
    %466 = vst [vmem:[#allocation2 + $0x120] sm:$0xff] %v362
    %467 = vst [vmem:[#allocation2 + $0x128] sm:$0xff] %v364
    %468 = vst [vmem:[#allocation2 + $0x130] sm:$0xff] %v366
    %469 = vst [vmem:[#allocation2 + $0x138] sm:$0xff] %v368
    %470 = vst [vmem:[#allocation2 + $0x140] sm:$0xff] %v372
    %471 = vst [vmem:[#allocation2 + $0x148] sm:$0xff] %v374
    %472 = vst [vmem:[#allocation2 + $0x150] sm:$0xff] %v376
    %473 = vst [vmem:[#allocation2 + $0x158] sm:$0xff] %v378
    %474 = vst [vmem:[#allocation2 + $0x160] sm:$0xff] %v382
    %475 = vst [vmem:[#allocation2 + $0x168] sm:$0xff] %v384
    %476 = vst [vmem:[#allocation2 + $0x170] sm:$0xff] %v386
    %477 = vst [vmem:[#allocation2 + $0x178] sm:$0xff] %v388
    %478 = vst [vmem:[#allocation2 + $0x180] sm:$0xff] %v392
    %479 = vst [vmem:[#allocation2 + $0x188] sm:$0xff] %v394
    %480 = vst [vmem:[#allocation2 + $0x190] sm:$0xff] %v396
    %481 = vst [vmem:[#allocation2 + $0x198] sm:$0xff] %v398
    %482 = vst [vmem:[#allocation2 + $0x1a0] sm:$0xff] %v402
    %483 = vst [vmem:[#allocation2 + $0x1a8] sm:$0xff] %v404
    %484 = vst [vmem:[#allocation2 + $0x1b0] sm:$0xff] %v406
    %485 = vst [vmem:[#allocation2 + $0x1b8] sm:$0xff] %v408
    %486 = vst [vmem:[#allocation2 + $0x1c0] sm:$0xff] %v412
    %487 = vst [vmem:[#allocation2 + $0x1c8] sm:$0xff] %v414
    %488 = vst [vmem:[#allocation2 + $0x1d0] sm:$0xff] %v416
    %489 = vst [vmem:[#allocation2 + $0x1d8] sm:$0xff] %v418
    %490 = vst [vmem:[#allocation2 + $0x1e0] sm:$0xff] %v422
    %491 = vst [vmem:[#allocation2 + $0x1e8] sm:$0xff] %v424
    %492 = vst [vmem:[#allocation2 + $0x1f0] sm:$0xff] %v426
    %493 = vst [vmem:[#allocation2 + $0x1f8] sm:$0xff] %v428
    // Predicated region
    $region10: #{nnk_ec_prepare_dictionary.1} parent=1 // pred_check
      _
    $region11: #{nnk_ec_prepare_dictionary.1} parent=1 // pred_check_branch
      %495 = sbr.rel (0) target = $region13
    $region12: #{nnk_ec_prepare_dictionary.1} parent=1 // pred_region
      %s497 = ssub.s32 8192, 8192
      %498 = vsyncadd [#allocation3], %s497
      %s499 = sshll.u32 [#allocation2], 4
      %s500 = int_to_ptr.vmem [resolvable:$true] %s499
      %505 = dma.vmem_to_hbm [thread:$0]  %s500, 8192, %s2, [#allocation3], 256, 256, 16
    $region13: #{nnk_ec_prepare_dictionary.1} parent=1 // pred_fallthru
      _
    // Predicated region
    $region14: #{nnk_ec_prepare_dictionary.1} parent=1 // pred_check
      _
    $region15: #{nnk_ec_prepare_dictionary.1} parent=1 // pred_check_branch
      %507 = sbr.rel (0) target = $region17
    $region16: #{nnk_ec_prepare_dictionary.1} parent=1 // pred_region
      %508 = dma.done [#allocation3], 8192
    $region17: #{nnk_ec_prepare_dictionary.1} parent=1 // pred_fallthru
      _
    %509 = vsyncpa [#allocation3], 1

</llo_original>
